<compile_context>
chip_gen: v6e
topology: v6e:2x2x1
jax: 0.10.0
libtpu: 0.0.40
codegen_flags: <defaults>
</compile_context>

<pallas_src>
import numpy as np
import jax
import jax.numpy as jnp
from jax.experimental import pallas as pl
from jax.experimental.pallas import tpu as pltpu

_LANE = 128   # vreg lane width
_SUB = 8      # vreg sublane count


def build_positional_encoding(max_len: int, embed_dim: int) -> jnp.ndarray:
    """Deterministic sinusoidal table, identical math to the PyTorch module."""
    pos = np.arange(max_len, dtype=np.float64)[:, None]            # (max_len, 1)
    i = np.arange(embed_dim, dtype=np.float64)[None, :]            # (1, D)
    angle_rads = pos / np.power(10000.0, 2.0 * (i // 2) / np.float32(embed_dim))
    angle_rads[:, 0::2] = np.sin(angle_rads[:, 0::2])
    angle_rads[:, 1::2] = np.cos(angle_rads[:, 1::2])
    pos_encoding = angle_rads[None, ...]                            # (1, max_len, D)
    return jnp.asarray(pos_encoding, dtype=jnp.float32)


def _add_pos_kernel(x_ref, pos_ref, o_ref):
    # Single dense add + single dense store per vreg (v5e has one vst slot).
    # Dense path : x/o (bt, rt, 128), pos (1, rt, 128)  -> broadcast over dim 0
    # Ragged path: x/o (bt, tl),      pos (1, tl)
    o_ref[...] = (x_ref[...] + pos_ref[...]).astype(o_ref.dtype)


def _round_up(a: int, m: int) -> int:
    return ((a + m - 1) // m) * m


def _vmem_capacity_bytes() -> int:
    """Per-generation VMEM capacity; conservative (v7x-sized) default."""
    try:
        info = pltpu.get_tpu_info()
        cap = getattr(info, "vmem_capacity_bytes", None)
        if cap:
            return int(cap)
    except Exception:
        pass
    return 64 << 20


def _forward_dense(x, pos, B, L, itemsize, budget_elems, vmem_cap, donate_x):
    """Main path: L % 128 == 0. 3-D sublane/lane-dense blocks."""
    rows = L // _LANE
    xf = x.reshape(B, rows, _LANE)
    pf = pos.reshape(1, rows, _LANE)

    # Batch tile: leading block dim (no sublane/lane constraint). Fold a lot of
    # batch when rows are few; otherwise keep it modest and let rt carry size.
    bt = min(B, max(_SUB, budget_elems // max(1, rows * _LANE)))

    # Row tile: multiple of 8 (or the full row extent) -> sublane-dense blocks.
    rt = min(rows, max(1, budget_elems // (bt * _LANE)))
    if rt < rows:
        rt = max(_SUB, (rt // _SUB) * _SUB)
    # Give the parallel row-tile axis >= 2 iterations so both v7x TCs get work.
    if pl.cdiv(rows, rt) == 1 and rows > _SUB:
        rt = max(_SUB, _round_up(-(-rows // 2), _SUB))

    n_l = pl.cdiv(rows, rt)   # leading, "parallel"
    n_b = pl.cdiv(B, bt)      # innermost, "arbitrary" -> pos block reused across batch

    # VMEM estimate including (8,128) layout padding; double-buffered blocks.
    rt_pad = _round_up(rt, _SUB)
    est = 2 * (2 * bt * rt_pad * _LANE + rt_pad * _LANE) * itemsize
    vmem_limit = int(min(max(2 * est, 32 << 20), (vmem_cap * 3) // 4))

    kwargs = {}
    if donate_x:
        kwargs["input_output_aliases"] = {0: 0}

    out = pl.pallas_call(
        _add_pos_kernel,
        out_shape=jax.ShapeDtypeStruct((B, rows, _LANE), x.dtype),
        grid=(n_l, n_b),
        in_specs=[
            pl.BlockSpec((bt, rt, _LANE), lambda l, b: (b, l, 0)),
            pl.BlockSpec((1, rt, _LANE), lambda l, b: (0, l, 0)),   # batch-independent -> no re-DMA
        ],
        out_specs=pl.BlockSpec((bt, rt, _LANE), lambda l, b: (b, l, 0)),
        compiler_params=pltpu.CompilerParams(
            dimension_semantics=("parallel", "arbitrary"),
            vmem_limit_bytes=vmem_limit,
        ),
        **kwargs,
    )(xf, pf)
    return out.reshape(x.shape)


def _forward_ragged(x, pos, B, L, itemsize, budget_elems, vmem_cap):
    """Fallback: L % 128 != 0. 2-D (B, L); lane tiles in 128-multiples (cdiv)."""
    xf = x.reshape(B, L)
    pf = pos.reshape(1, L)

    # Second-to-last block dim: full batch extent (B<=8) or a multiple of 8.
    bt = B if B <= _SUB else _SUB
    bt_pad = _round_up(bt, _SUB)

    tl = min(L, max(_LANE, budget_elems // bt_pad))
    if tl < L:
        tl = max(_LANE, (tl // _LANE) * _LANE)

    n_l = pl.cdiv(L, tl)
    n_b = pl.cdiv(B, bt)

    tl_pad = _round_up(tl, _LANE)
    est = 2 * (2 * bt_pad * tl_pad + _SUB * tl_pad) * itemsize
    vmem_limit = int(min(max(2 * est, 32 << 20), (vmem_cap * 3) // 4))

    out = pl.pallas_call(
        _add_pos_kernel,
        out_shape=jax.ShapeDtypeStruct((B, L), x.dtype),
        grid=(n_l, n_b),
        in_specs=[
            pl.BlockSpec((bt, tl), lambda l, b: (b, l)),
            pl.BlockSpec((1, tl), lambda l, b: (0, l)),
        ],
        out_specs=pl.BlockSpec((bt, tl), lambda l, b: (b, l)),
        compiler_params=pltpu.CompilerParams(
            dimension_semantics=("parallel", "arbitrary"),
            vmem_limit_bytes=vmem_limit,
        ),
    )(xf, pf)
    return out.reshape(x.shape)


def position_embedding_forward(x: jnp.ndarray, pos_encoding: jnp.ndarray,
                               *, donate_x: bool = False) -> jnp.ndarray:
    """x: (B, S, D); pos_encoding: (1, max_len, D). Returns x + pos_encoding[:, :S, :]."""
    B, S, D = x.shape
    if S > pos_encoding.shape[1]:
        raise ValueError(f"seq_len {S} exceeds positional-table max_len {pos_encoding.shape[1]}")
    if D != pos_encoding.shape[2]:
        raise ValueError(f"embed_dim mismatch: x has {D}, table has {pos_encoding.shape[2]}")

    pos = pos_encoding[:, :S, :].astype(x.dtype)        # (1, S, D), matches PyTorch slicing
    L = S * D
    itemsize = jnp.dtype(x.dtype).itemsize

    vmem_cap = _vmem_capacity_bytes()
    # Per-operand block budget: ~4 MiB on 64 MiB VMEM (v7x), ~8 MiB on 128 MiB (v5e/v6e).
    budget_bytes = max(2 << 20, vmem_cap // 16)
    budget_elems = max(_SUB * _LANE, budget_bytes // itemsize)

    if L % _LANE == 0:
        return _forward_dense(x, pos, B, L, itemsize, budget_elems, vmem_cap, donate_x)
    return _forward_ragged(x, pos, B, L, itemsize, budget_elems, vmem_cap)


if __name__ == "__main__":
    # Small shapes consistent with the module's forward: (batch, seq, embed_dim)
    B, S, D = 2, 8, 32
    MAX_LEN = 16

    key = jax.random.PRNGKey(0)
    x = jax.random.normal(key, (B, S, D), dtype=jnp.float32)

    pos_encoding = build_positional_encoding(MAX_LEN, D)

    out = jax.block_until_ready(position_embedding_forward(x, pos_encoding))

    # Reference check (pure JAX, mirrors PyTorch semantics exactly).
    ref = x + pos_encoding[:, :S, :]
    np.testing.assert_allclose(np.asarray(out), np.asarray(ref), rtol=1e-6, atol=1e-6)

    print("KERNEL_OK")
</pallas_src>

<mosaic_0001>
module attributes {stable_mosaic.version = 11 : i64} {
  func.func @_add_pos_kernel(%arg0: i32, %arg1: i32, %arg2: memref<2x2x128xf32, #tpu.memory_space<vmem>>, %arg3: memref<1x2x128xf32, #tpu.memory_space<vmem>>, %arg4: memref<2x2x128xf32, #tpu.memory_space<vmem>>) attributes {dimension_semantics = [#tpu.dimension_semantics<parallel>, #tpu.dimension_semantics<arbitrary>], iteration_bounds = array<i64: 1, 1>, scalar_prefetch = 0 : i64, scratch_operands = 0 : i64, tpu.core_type = #tpu.core_type<tc>, window_params = [{transform_indices = @transform_0, window_bounds = array<i64: 2, 2, 128>}, {transform_indices = @transform_1, window_bounds = array<i64: 1, 2, 128>}, {transform_indices = @transform_2, window_bounds = array<i64: 2, 2, 128>}]} {
    %c0 = arith.constant 0 : index
    %c0_0 = arith.constant 0 : index
    %c0_1 = arith.constant 0 : index
    %0 = vector.load %arg2[%c0, %c0_0, %c0_1] : memref<2x2x128xf32, #tpu.memory_space<vmem>>, vector<2x2x128xf32>
    %c0_2 = arith.constant 0 : index
    %c0_3 = arith.constant 0 : index
    %c0_4 = arith.constant 0 : index
    %1 = vector.load %arg3[%c0_2, %c0_3, %c0_4] : memref<1x2x128xf32, #tpu.memory_space<vmem>>, vector<1x2x128xf32>
    %2 = vector.broadcast %1 : vector<1x2x128xf32> to vector<2x2x128xf32>
    %3 = arith.addf %0, %2 : vector<2x2x128xf32>
    %c0_5 = arith.constant 0 : index
    %c0_6 = arith.constant 0 : index
    %c0_7 = arith.constant 0 : index
    %4 = vector.load %arg4[%c0_5, %c0_6, %c0_7] : memref<2x2x128xf32, #tpu.memory_space<vmem>>, vector<2x2x128xf32>
    tpu.vector_store %arg4[%c0_5, %c0_6, %c0_7], %3 {strides = array<i32>} : memref<2x2x128xf32, #tpu.memory_space<vmem>>, vector<2x2x128xf32>,
    return
  }
  func.func @transform_0(%arg0: i32, %arg1: i32) -> (i32, i32, i32) {
    %c0_i32 = arith.constant 0 : i32
    %c0_i32_0 = arith.constant 0 : i32
    return %arg1, %arg0, %c0_i32 : i32, i32, i32
  }
  func.func @transform_1(%arg0: i32, %arg1: i32) -> (i32, i32, i32) {
    %c0_i32 = arith.constant 0 : i32
    %c0_i32_0 = arith.constant 0 : i32
    %c0_i32_1 = arith.constant 0 : i32
    return %c0_i32, %arg0, %c0_i32_0 : i32, i32, i32
  }
  func.func @transform_2(%arg0: i32, %arg1: i32) -> (i32, i32, i32) {
    %c0_i32 = arith.constant 0 : i32
    %c0_i32_0 = arith.constant 0 : i32
    return %arg1, %arg0, %c0_i32 : i32, i32, i32
  }
}

</mosaic_0001>

<llo_original>
// kernel: tpu_custom_call.1
$region0: #{tpu_custom_call.1}
  #allocation0 [shape = 'u32[]', space=smem, size = 0x4, offset = 0x4, fixed_abs, tag = 'smem constant byte address 0x4 - core index']
  #allocation1 [shape = 'u32[144,128]{1,0:T(1,128)}', space=vmem, size = 0x12000, scoped, tag = 'internal scratch']
  %s0 = inlined_call_operand.hbm [shape: f32[2,2,128], index: 0, kind: input, shape index: {}]
  %s1 = inlined_call_operand.hbm [shape: f32[1,2,128], index: 1, kind: input, shape index: {}]
  %s2 = inlined_call_operand.hbm [shape: f32[2,2,128], index: 2, kind: output, shape index: {}]
  %s3 = sld [smem:[#allocation0]]
  $region26: #{tpu_custom_call.1} parent=0
    _
  %s5 = ssub.s32 1, %s3
  %s6 = scalar_select 0, %s5, %s3
  $region1: #{tpu_custom_call.1} parent=0
    #allocation2 [shape = 'u8[2048]{0}', space=vmem, size = 0x800, scoped, tag = 'input window, operand 0, single buffered']
    #allocation3 [shape = 's32[1]{0}', space=sflag, size = 0x4, scoped, tag = 'scoped memory for tpu_custom_call.1']
    #allocation4 [shape = 's32[1]{0}', space=sflag, size = 0x4, scoped, tag = 'scoped memory for tpu_custom_call.1']
    #allocation5 [shape = 'u8[1024]{0}', space=vmem, size = 0x400, scoped, tag = 'input window, operand 1, single buffered']
    #allocation6 [shape = 's32[1]{0}', space=sflag, size = 0x4, scoped, tag = 'scoped memory for tpu_custom_call.1']
    #allocation7 [shape = 'u8[2048]{0}', space=vmem, size = 0x800, scoped, tag = 'output window, operand 0, single buffered']
    %7 = vsyncpa [#allocation3], 0
    %8 = vsyncpa [#allocation6], 0
    %9 = vsyncpa [#allocation4], 0
    // Predicated region
    $region2: #{tpu_custom_call.1} parent=1 // pred_check
      _
    $region3: #{tpu_custom_call.1} parent=1 // pred_check_branch
      %11 = sbr.rel (0) target = $region5
    $region4: #{tpu_custom_call.1} parent=1 // pred_region
      %s13 = ssub.s32 64, 64
      %14 = vsyncadd [#allocation3], %s13
      %s15 = sshll.u32 [#allocation2], 4
      %s16 = int_to_ptr.vmem [resolvable:$true] %s15
      %21 = dma.hbm_to_vmem [thread:$0]  %s0, 64, %s16, [#allocation3], 32, 32, 2
    $region5: #{tpu_custom_call.1} parent=1 // pred_fallthru
      _
    // Predicated region
    $region6: #{tpu_custom_call.1} parent=1 // pred_check
      _
    $region7: #{tpu_custom_call.1} parent=1 // pred_check_branch
      %23 = sbr.rel (0) target = $region9
    $region8: #{tpu_custom_call.1} parent=1 // pred_region
      %s25 = ssub.s32 32, 32
      %26 = vsyncadd [#allocation6], %s25
      %s28 = sshll.u32 [#allocation5], 4
      %s29 = int_to_ptr.vmem [resolvable:$true] %s28
      %31 = dma.hbm_to_vmem [thread:$0]  %s1, 32, %s29, [#allocation6]
    $region9: #{tpu_custom_call.1} parent=1 // pred_fallthru
      _
    // Predicated region
    $region10: #{tpu_custom_call.1} parent=1 // pred_check
      _
    $region11: #{tpu_custom_call.1} parent=1 // pred_check_branch
      %33 = sbr.rel (0) target = $region13
    $region12: #{tpu_custom_call.1} parent=1 // pred_region
      %34 = dma.done [#allocation3], 64
    $region13: #{tpu_custom_call.1} parent=1 // pred_fallthru
      _
    // Predicated region
    $region14: #{tpu_custom_call.1} parent=1 // pred_check
      _
    $region15: #{tpu_custom_call.1} parent=1 // pred_check_branch
      %36 = sbr.rel (0) target = $region17
    $region16: #{tpu_custom_call.1} parent=1 // pred_region
      %37 = dma.done [#allocation6], 32
    $region17: #{tpu_custom_call.1} parent=1 // pred_fallthru
      _
    %v38 = vld [vmem:[#allocation2] sm:$0x3]
    %v39 = vld [vmem:[#allocation2 + $0x2] sm:$0x3]
    %v40 = vld [vmem:[#allocation5] sm:$0x3]
    %v41 = vadd.f32 %v38, %v40
    %v42 = vadd.f32 %v39, %v40
    %43 = vst [vmem:[#allocation7] sm:$0x3] %v41
    %44 = vst [vmem:[#allocation7 + $0x2] sm:$0x3] %v42
    // Predicated region
    $region18: #{tpu_custom_call.1} parent=1 // pred_check
      _
    $region19: #{tpu_custom_call.1} parent=1 // pred_check_branch
      %46 = sbr.rel (0) target = $region21
    $region20: #{tpu_custom_call.1} parent=1 // pred_region
      %s48 = ssub.s32 64, 64
      %49 = vsyncadd [#allocation4], %s48
      %s50 = sshll.u32 [#allocation7], 4
      %s51 = int_to_ptr.vmem [resolvable:$true] %s50
      %56 = dma.vmem_to_hbm [thread:$0]  %s51, 64, %s2, [#allocation4], 32, 32, 2
    $region21: #{tpu_custom_call.1} parent=1 // pred_fallthru
      _
    // Predicated region
    $region22: #{tpu_custom_call.1} parent=1 // pred_check
      _
    $region23: #{tpu_custom_call.1} parent=1 // pred_check_branch
      %58 = sbr.rel (0) target = $region25
    $region24: #{tpu_custom_call.1} parent=1 // pred_region
      %59 = dma.done [#allocation4], 64
    $region25: #{tpu_custom_call.1} parent=1 // pred_fallthru
      _
    %60 = vsyncpa [#allocation3], 1
    %61 = vsyncpa [#allocation6], 1
    %62 = vsyncpa [#allocation4], 1

</llo_original>
